<compile_context>
chip_gen: v5e
topology: v5e:2x2
jax: 0.10.0
libtpu: 0.0.40
codegen_flags: <defaults>
</compile_context>

<pallas_src>
import jax
import jax.numpy as jnp
from jax.experimental import pallas as pl
from jax.experimental.pallas import tpu as pltpu


def _mnn_loss_kernel(sim_ref, ass_ref, nll_ref, num_ref):
    sim = sim_ref[...].astype(jnp.float32)   # (Bt, M, N)
    a = ass_ref[...].astype(jnp.float32)     # (Bt, M, N)

    # TODO(synk): the PyTorch "similarity > 1 + 1e-6" logging warning and the
    # NaN assert are host-side diagnostics with no clean in-kernel equivalent.

    # scores = 2 - sqrt(clamp(2*(1 - sim), min=1e-6))
    scores = 2.0 - jnp.sqrt(jnp.maximum(2.0 * (1.0 - sim), 1e-6))

    # Single shared (per-batch) shift -> exp evaluated exactly once per element.
    m_g = jnp.max(jnp.max(scores, axis=2, keepdims=True),
                  axis=1, keepdims=True)                          # (Bt, 1, 1)
    e = jnp.exp(scores - m_g)                                     # (Bt, M, N)

    # Row-wise (over N) and column-wise (over M) log-sum-exp, shared shift.
    lse_row = m_g + jnp.log(jnp.sum(e, axis=2, keepdims=True))    # (Bt, M, 1)
    lse_col = m_g + jnp.log(jnp.sum(e, axis=1, keepdims=True))    # (Bt, 1, N)

    # Assignment marginals (also give the match count).
    row_a = jnp.sum(a, axis=2, keepdims=True)                     # (Bt, M, 1)
    col_a = jnp.sum(a, axis=1, keepdims=True)                     # (Bt, 1, N)
    tot_a = jnp.sum(row_a, axis=1, keepdims=True)                 # (Bt, 1, 1)

    # sum(A * scores) per batch.
    sa = jnp.sum(jnp.sum(a * scores, axis=2, keepdims=True),
                 axis=1, keepdims=True)                           # (Bt, 1, 1)

    # sum(prob0*A) + sum(prob1*A)
    #   = 2*sum(A*scores) - <row_a, lse_row> - <col_a, lse_col>
    t_row = jnp.sum(row_a * lse_row, axis=1, keepdims=True)       # (Bt, 1, 1)
    t_col = jnp.sum(col_a * lse_col, axis=2, keepdims=True)       # (Bt, 1, 1)

    num = jnp.maximum(tot_a, 1.0)                                 # (Bt, 1, 1)
    nll = -0.5 * (2.0 * sa - t_row - t_col) / num                 # (Bt, 1, 1)

    # Lane-dense, unmasked scalar writeback (value replicated over 128 lanes).
    nll_ref[...] = jnp.broadcast_to(nll, nll_ref.shape)
    num_ref[...] = jnp.broadcast_to(num, num_ref.shape)


def _pick_batch_tile(B, M, N, sim_bytes, ass_bytes):
    """Largest divisor of B whose block fits comfortably in VMEM on all chips."""
    # double-buffered inputs + ~2 live f32 temporaries (scores, e) per element.
    per_batch = M * N * (2 * (sim_bytes + ass_bytes) + 8)
    budget = 20 * 1024 * 1024
    bt = max(1, min(B, budget // max(per_batch, 1)))
    while B % bt:
        bt -= 1
    return bt


def mnn_loss(similarity: jax.Array, gt_assignment: jax.Array, weight: float = 1.0):
    """Pallas implementation of MNNLoss.forward.

    Args:
      similarity:    [B, M, N] float similarity matrix.
      gt_assignment: [B, M, N] 0/1 ground-truth assignment (any dtype).
      weight:        scalar loss weight.

    Returns:
      loss: scalar float32 (nll.mean() * weight)
      loss_info: dict mirroring the PyTorch module.
    """
    B, M, N = similarity.shape

    # Keep similarity in its floating dtype (f32 or bf16); cast in-kernel.
    if not jnp.issubdtype(similarity.dtype, jnp.floating):
        similarity = similarity.astype(jnp.float32)
    # Stream the 0/1 mask narrow (bf16) unless it already arrives as f32/bf16.
    if gt_assignment.dtype != jnp.float32 and gt_assignment.dtype != jnp.bfloat16:
        gt_assignment = gt_assignment.astype(jnp.bfloat16)

    bt = _pick_batch_tile(B, M, N,
                          similarity.dtype.itemsize, gt_assignment.dtype.itemsize)
    grid = (B // bt,)

    # TODO(synk): for very large M*N (block > ~20 MiB, e.g. v7x's 64 MiB VMEM)
    # this would need an extra M-tile grid axis with online column-wise
    # exp-sum accumulation; not needed at realistic keypoint counts.

    nll_out, num_out = pl.pallas_call(
        _mnn_loss_kernel,
        out_shape=(
            jax.ShapeDtypeStruct((B, 1, 128), jnp.float32),
            jax.ShapeDtypeStruct((B, 1, 128), jnp.float32),
        ),
        grid_spec=pltpu.PrefetchScalarGridSpec(
            num_scalar_prefetch=0,
            grid=grid,
            in_specs=[
                pl.BlockSpec((bt, M, N), lambda i: (i, 0, 0)),
                pl.BlockSpec((bt, M, N), lambda i: (i, 0, 0)),
            ],
            out_specs=[
                pl.BlockSpec((bt, 1, 128), lambda i: (i, 0, 0)),
                pl.BlockSpec((bt, 1, 128), lambda i: (i, 0, 0)),
            ],
        ),
        compiler_params=pltpu.CompilerParams(
            dimension_semantics=("parallel",),
            vmem_limit_bytes=48 * 1024 * 1024,
        ),
    )(similarity, gt_assignment)

    nll = nll_out[:, 0, 0]   # [B]
    num = num_out[:, 0, 0]   # [B]
    loss = jnp.mean(nll) * jnp.float32(weight)

    loss_info = {
        "matcher_n_pair_nll": loss,
        "matcher_total": loss,
        "matcher_num_matchable": jnp.mean(num),
    }
    return loss, loss_info


def _mnn_loss_ref(similarity, gt_assignment, weight):
    """Pure-JAX reference mirroring the PyTorch module."""
    sim = similarity.astype(jnp.float32)
    a = gt_assignment.astype(jnp.float32)
    scores = 2.0 - jnp.sqrt(jnp.maximum(2.0 * (1.0 - sim), 1e-6))
    prob0 = jax.nn.log_softmax(scores, axis=2)
    prob1 = jax.nn.log_softmax(scores, axis=1)
    num = jnp.maximum(a.sum((1, 2)), 1.0)
    nll0 = (prob0 * a).sum((1, 2)) / num
    nll1 = (prob1 * a).sum((1, 2)) / num
    nll = -(nll0 + nll1) / 2.0
    return nll.mean() * jnp.float32(weight)


if __name__ == "__main__":
    # The module's only __init__ arg is `weight`.
    weight = 1.0

    B, M, N = 2, 16, 128
    key = jax.random.PRNGKey(0)
    k_sim, k_ass = jax.random.split(key)

    # Cosine-similarity-like values in [-1, 1].
    similarity = jax.random.uniform(k_sim, (B, M, N), jnp.float32,
                                    minval=-1.0, maxval=1.0)
    # Sparse binary ground-truth assignment, streamed as bf16.
    gt_assignment = jax.random.bernoulli(k_ass, 0.05, (B, M, N)).astype(jnp.bfloat16)

    loss, loss_info = mnn_loss(similarity, gt_assignment, weight)
    jax.block_until_ready(loss)
    jax.block_until_ready(loss_info["matcher_num_matchable"])

    # Correctness vs a pure-JAX reference of the PyTorch forward.
    ref = _mnn_loss_ref(similarity, gt_assignment, weight)
    assert jnp.allclose(loss, ref, rtol=1e-3, atol=1e-3), (float(loss), float(ref))

    print("KERNEL_OK")
</pallas_src>

<mosaic_0001>
module attributes {stable_mosaic.version = 11 : i64} {
  func.func @_mnn_loss_kernel(%arg0: i32, %arg1: memref<2x16x128xf32, #tpu.memory_space<vmem>>, %arg2: memref<2x16x128xbf16, #tpu.memory_space<vmem>>, %arg3: memref<2x1x128xf32, #tpu.memory_space<vmem>>, %arg4: memref<2x1x128xf32, #tpu.memory_space<vmem>>) attributes {dimension_semantics = [#tpu.dimension_semantics<parallel>], iteration_bounds = array<i64: 1>, scalar_prefetch = 0 : i64, scratch_operands = 0 : i64, tpu.core_type = #tpu.core_type<tc>, window_params = [{transform_indices = @transform_0, window_bounds = array<i64: 2, 16, 128>}, {transform_indices = @transform_1, window_bounds = array<i64: 2, 16, 128>}, {transform_indices = @transform_2, window_bounds = array<i64: 2, 1, 128>}, {transform_indices = @transform_3, window_bounds = array<i64: 2, 1, 128>}]} {
    %c0 = arith.constant 0 : index
    %c0_0 = arith.constant 0 : index
    %c0_1 = arith.constant 0 : index
    %0 = vector.load %arg1[%c0, %c0_0, %c0_1] : memref<2x16x128xf32, #tpu.memory_space<vmem>>, vector<2x16x128xf32>
    %c0_2 = arith.constant 0 : index
    %c0_3 = arith.constant 0 : index
    %c0_4 = arith.constant 0 : index
    %1 = vector.load %arg2[%c0_2, %c0_3, %c0_4] : memref<2x16x128xbf16, #tpu.memory_space<vmem>>, vector<2x16x128xbf16>
    %2 = arith.extf %1 : vector<2x16x128xbf16> to vector<2x16x128xf32>
    %cst = arith.constant 1.000000e+00 : f32
    %3 = vector.broadcast %cst : f32 to vector<2x16x128xf32>
    %4 = arith.subf %3, %0 : vector<2x16x128xf32>
    %cst_5 = arith.constant 2.000000e+00 : f32
    %5 = vector.broadcast %cst_5 : f32 to vector<2x16x128xf32>
    %6 = arith.mulf %5, %4 : vector<2x16x128xf32>
    %cst_6 = arith.constant 9.99999997E-7 : f32
    %7 = vector.broadcast %cst_6 : f32 to vector<2x16x128xf32>
    %8 = arith.maximumf %6, %7 : vector<2x16x128xf32>
    %9 = math.sqrt %8 : vector<2x16x128xf32>
    %cst_7 = arith.constant 2.000000e+00 : f32
    %10 = vector.broadcast %cst_7 : f32 to vector<2x16x128xf32>
    %11 = arith.subf %10, %9 : vector<2x16x128xf32>
    %cst_8 = arith.constant dense<0xFF800000> : vector<2x16xf32>
    %12 = vector.multi_reduction <maximumf>, %11, %cst_8 [2] : vector<2x16x128xf32> to vector<2x16xf32>
    %13 = vector.shape_cast %12 : vector<2x16xf32> to vector<2x16x1xf32>
    %cst_9 = arith.constant dense<0xFF800000> : vector<2x1xf32>
    %14 = vector.multi_reduction <maximumf>, %13, %cst_9 [1] : vector<2x16x1xf32> to vector<2x1xf32>
    %15 = vector.shape_cast %14 : vector<2x1xf32> to vector<2x1x1xf32>
    %16 = vector.broadcast %15 : vector<2x1x1xf32> to vector<2x16x128xf32>
    %17 = arith.subf %11, %16 : vector<2x16x128xf32>
    %18 = math.exp %17 : vector<2x16x128xf32>
    %cst_10 = arith.constant dense<0.000000e+00> : vector<2x16xf32>
    %19 = vector.multi_reduction <add>, %18, %cst_10 [2] : vector<2x16x128xf32> to vector<2x16xf32>
    %20 = vector.shape_cast %19 : vector<2x16xf32> to vector<2x16x1xf32>
    %21 = math.log %20 : vector<2x16x1xf32>
    %22 = vector.broadcast %15 : vector<2x1x1xf32> to vector<2x16x1xf32>
    %23 = arith.addf %22, %21 : vector<2x16x1xf32>
    %cst_11 = arith.constant dense<0.000000e+00> : vector<2x128xf32>
    %24 = vector.multi_reduction <add>, %18, %cst_11 [1] : vector<2x16x128xf32> to vector<2x128xf32>
    %25 = vector.shape_cast %24 : vector<2x128xf32> to vector<2x1x128xf32>
    %26 = math.log %25 : vector<2x1x128xf32>
    %27 = vector.broadcast %15 : vector<2x1x1xf32> to vector<2x1x128xf32>
    %28 = arith.addf %27, %26 : vector<2x1x128xf32>
    %cst_12 = arith.constant dense<0.000000e+00> : vector<2x16xf32>
    %29 = vector.multi_reduction <add>, %2, %cst_12 [2] : vector<2x16x128xf32> to vector<2x16xf32>
    %30 = vector.shape_cast %29 : vector<2x16xf32> to vector<2x16x1xf32>
    %cst_13 = arith.constant dense<0.000000e+00> : vector<2x128xf32>
    %31 = vector.multi_reduction <add>, %2, %cst_13 [1] : vector<2x16x128xf32> to vector<2x128xf32>
    %32 = vector.shape_cast %31 : vector<2x128xf32> to vector<2x1x128xf32>
    %cst_14 = arith.constant dense<0.000000e+00> : vector<2x1xf32>
    %33 = vector.multi_reduction <add>, %30, %cst_14 [1] : vector<2x16x1xf32> to vector<2x1xf32>
    %34 = vector.shape_cast %33 : vector<2x1xf32> to vector<2x1x1xf32>
    %35 = arith.mulf %2, %11 : vector<2x16x128xf32>
    %cst_15 = arith.constant dense<0.000000e+00> : vector<2x16xf32>
    %36 = vector.multi_reduction <add>, %35, %cst_15 [2] : vector<2x16x128xf32> to vector<2x16xf32>
    %37 = vector.shape_cast %36 : vector<2x16xf32> to vector<2x16x1xf32>
    %cst_16 = arith.constant dense<0.000000e+00> : vector<2x1xf32>
    %38 = vector.multi_reduction <add>, %37, %cst_16 [1] : vector<2x16x1xf32> to vector<2x1xf32>
    %39 = vector.shape_cast %38 : vector<2x1xf32> to vector<2x1x1xf32>
    %40 = arith.mulf %30, %23 : vector<2x16x1xf32>
    %cst_17 = arith.constant dense<0.000000e+00> : vector<2x1xf32>
    %41 = vector.multi_reduction <add>, %40, %cst_17 [1] : vector<2x16x1xf32> to vector<2x1xf32>
    %42 = vector.shape_cast %41 : vector<2x1xf32> to vector<2x1x1xf32>
    %43 = arith.mulf %32, %28 : vector<2x1x128xf32>
    %cst_18 = arith.constant dense<0.000000e+00> : vector<2x1xf32>
    %44 = vector.multi_reduction <add>, %43, %cst_18 [2] : vector<2x1x128xf32> to vector<2x1xf32>
    %45 = vector.shape_cast %44 : vector<2x1xf32> to vector<2x1x1xf32>
    %cst_19 = arith.constant 1.000000e+00 : f32
    %46 = vector.broadcast %cst_19 : f32 to vector<2x1x1xf32>
    %47 = arith.maximumf %34, %46 : vector<2x1x1xf32>
    %cst_20 = arith.constant 2.000000e+00 : f32
    %48 = vector.broadcast %cst_20 : f32 to vector<2x1x1xf32>
    %49 = arith.mulf %48, %39 : vector<2x1x1xf32>
    %50 = arith.subf %49, %42 : vector<2x1x1xf32>
    %51 = arith.subf %50, %45 : vector<2x1x1xf32>
    %cst_21 = arith.constant -5.000000e-01 : f32
    %52 = vector.broadcast %cst_21 : f32 to vector<2x1x1xf32>
    %53 = arith.mulf %52, %51 : vector<2x1x1xf32>
    %54 = arith.divf %53, %47 : vector<2x1x1xf32>
    %55 = vector.shape_cast %54 : vector<2x1x1xf32> to vector<2x1x1xf32>
    %56 = vector.broadcast %55 : vector<2x1x1xf32> to vector<2x1x128xf32>
    %c0_22 = arith.constant 0 : index
    %c0_23 = arith.constant 0 : index
    %c0_24 = arith.constant 0 : index
    %57 = vector.load %arg3[%c0_22, %c0_23, %c0_24] : memref<2x1x128xf32, #tpu.memory_space<vmem>>, vector<2x1x128xf32>
    tpu.vector_store %arg3[%c0_22, %c0_23, %c0_24], %56 {strides = array<i32>} : memref<2x1x128xf32, #tpu.memory_space<vmem>>, vector<2x1x128xf32>,
    %58 = vector.shape_cast %47 : vector<2x1x1xf32> to vector<2x1x1xf32>
    %59 = vector.broadcast %58 : vector<2x1x1xf32> to vector<2x1x128xf32>
    %c0_25 = arith.constant 0 : index
    %c0_26 = arith.constant 0 : index
    %c0_27 = arith.constant 0 : index
    %60 = vector.load %arg4[%c0_25, %c0_26, %c0_27] : memref<2x1x128xf32, #tpu.memory_space<vmem>>, vector<2x1x128xf32>
    tpu.vector_store %arg4[%c0_25, %c0_26, %c0_27], %59 {strides = array<i32>} : memref<2x1x128xf32, #tpu.memory_space<vmem>>, vector<2x1x128xf32>,
    return
  }
  func.func @transform_0(%arg0: i32) -> (i32, i32, i32) {
    %c0_i32 = arith.constant 0 : i32
    %c0_i32_0 = arith.constant 0 : i32
    %c0_i32_1 = arith.constant 0 : i32
    return %arg0, %c0_i32, %c0_i32_0 : i32, i32, i32
  }
  func.func @transform_1(%arg0: i32) -> (i32, i32, i32) {
    %c0_i32 = arith.constant 0 : i32
    %c0_i32_0 = arith.constant 0 : i32
    %c0_i32_1 = arith.constant 0 : i32
    return %arg0, %c0_i32, %c0_i32_0 : i32, i32, i32
  }
  func.func @transform_2(%arg0: i32) -> (i32, i32, i32) {
    %c0_i32 = arith.constant 0 : i32
    %c0_i32_0 = arith.constant 0 : i32
    %c0_i32_1 = arith.constant 0 : i32
    return %arg0, %c0_i32, %c0_i32_0 : i32, i32, i32
  }
  func.func @transform_3(%arg0: i32) -> (i32, i32, i32) {
    %c0_i32 = arith.constant 0 : i32
    %c0_i32_0 = arith.constant 0 : i32
    %c0_i32_1 = arith.constant 0 : i32
    return %arg0, %c0_i32, %c0_i32_0 : i32, i32, i32
  }
}

</mosaic_0001>

<llo_original>
// kernel: tpu_custom_call.1
$region0: #{tpu_custom_call.1}
  #allocation0 [shape = 'u32[]', space=smem, size = 0x4, offset = 0x4, fixed_abs, tag = 'smem constant byte address 0x4 - core index']
  #allocation1 [shape = 'u32[72,128]{1,0:T(1,128)}', space=vmem, size = 0x9000, scoped, tag = 'internal scratch']
  %s0 = inlined_call_operand.hbm [shape: f32[2,16,128], index: 0, kind: input, shape index: {}]
  %s1 = inlined_call_operand.hbm [shape: bf16[2,16,128], index: 1, kind: input, shape index: {}]
  %s2 = inlined_call_operand.hbm [shape: f32[2,1,128], index: 2, kind: output, shape index: {0}]
  %s3 = inlined_call_operand.hbm [shape: f32[2,1,128], index: 3, kind: output, shape index: {1}]
  %4 = xla_tuple %s2, %s3
  %s5 = sld [smem:[#allocation0]]
  $region34: #{tpu_custom_call.1} parent=0
    _
  %s7 = ssub.s32 1, %s5
  %s8 = scalar_select 0, %s7, %s5
  $region1: #{tpu_custom_call.1} parent=0
    #allocation2 [shape = 'u8[16384]{0}', space=vmem, size = 0x4000, scoped, tag = 'input window, operand 0, single buffered']
    #allocation3 [shape = 's32[1]{0}', space=sflag, size = 0x4, scoped, tag = 'scoped memory for tpu_custom_call.1']
    #allocation4 [shape = 's32[1]{0}', space=sflag, size = 0x4, scoped, tag = 'scoped memory for tpu_custom_call.1']
    #allocation5 [shape = 'u8[8192]{0}', space=vmem, size = 0x2000, scoped, tag = 'input window, operand 1, single buffered']
    #allocation6 [shape = 's32[1]{0}', space=sflag, size = 0x4, scoped, tag = 'scoped memory for tpu_custom_call.1']
    #allocation7 [shape = 'u8[1024]{0}', space=vmem, size = 0x400, scoped, tag = 'output window, operand 0, single buffered']
    #allocation8 [shape = 'u8[1024]{0}', space=vmem, size = 0x400, scoped, tag = 'output window, operand 1, single buffered']
    #allocation9 [shape = 's32[1]{0}', space=sflag, size = 0x4, scoped, tag = 'scoped memory for tpu_custom_call.1']
    %9 = vsyncpa [#allocation3], 0
    %10 = vsyncpa [#allocation6], 0
    %11 = vsyncpa [#allocation4], 0
    %12 = vsyncpa [#allocation9], 0
    // Predicated region
    $region2: #{tpu_custom_call.1} parent=1 // pred_check
      _
    $region3: #{tpu_custom_call.1} parent=1 // pred_check_branch
      %14 = sbr.rel (0) target = $region5
    $region4: #{tpu_custom_call.1} parent=1 // pred_region
      %16 = vsyncadd [#allocation3], 0
      %s17 = sshll.u32 %s0, 4
      %s18 = int_to_ptr.hbm [resolvable:$true] %s17
      %s19 = sshll.u32 [#allocation2], 4
      %s20 = int_to_ptr.vmem [resolvable:$true] %s19
      %25 = dma.hbm_to_vmem [thread:$0]  %s18, 512, %s20, [#allocation3], 128, 128, 8
    $region5: #{tpu_custom_call.1} parent=1 // pred_fallthru
      _
    // Predicated region
    $region6: #{tpu_custom_call.1} parent=1 // pred_check
      _
    $region7: #{tpu_custom_call.1} parent=1 // pred_check_branch
      %27 = sbr.rel (0) target = $region9
    $region8: #{tpu_custom_call.1} parent=1 // pred_region
      %29 = vsyncadd [#allocation6], 0
      %s30 = sshll.u32 %s1, 4
      %s31 = int_to_ptr.hbm [resolvable:$true] %s30
      %s32 = sshll.u32 [#allocation5], 4
      %s33 = int_to_ptr.vmem [resolvable:$true] %s32
      %38 = dma.hbm_to_vmem [thread:$0]  %s31, 256, %s33, [#allocation6], 64, 64, 4
    $region9: #{tpu_custom_call.1} parent=1 // pred_fallthru
      _
    // Predicated region
    $region10: #{tpu_custom_call.1} parent=1 // pred_check
      _
    $region11: #{tpu_custom_call.1} parent=1 // pred_check_branch
      %40 = sbr.rel (0) target = $region13
    $region12: #{tpu_custom_call.1} parent=1 // pred_region
      %42 = dma.done [#allocation3], 512
    $region13: #{tpu_custom_call.1} parent=1 // pred_fallthru
      _
    // Predicated region
    $region14: #{tpu_custom_call.1} parent=1 // pred_check
      _
    $region15: #{tpu_custom_call.1} parent=1 // pred_check_branch
      %44 = sbr.rel (0) target = $region17
    $region16: #{tpu_custom_call.1} parent=1 // pred_region
      %46 = dma.done [#allocation6], 256
    $region17: #{tpu_custom_call.1} parent=1 // pred_fallthru
      _
    %v47 = vld [vmem:[#allocation2] sm:$0xff]
    %v48 = vld [vmem:[#allocation2 + $0x8] sm:$0xff]
    %v49 = vld [vmem:[#allocation2 + $0x10] sm:$0xff]
    %v50 = vld [vmem:[#allocation2 + $0x18] sm:$0xff]
    %v51 = vld [vmem:[#allocation5] sm:$0xf]
    %v52 = vld [vmem:[#allocation5 + $0x4] sm:$0xf]
    %v53 = vld [vmem:[#allocation5 + $0x8] sm:$0xf]
    %v54 = vld [vmem:[#allocation5 + $0xc] sm:$0xf]
    %v55 = vunpack.c.l.bf16 %v51
    %v56 = vunpack.c.l.bf16 %v52
    %v57 = vunpack.c.l.bf16 %v53
    %v58 = vunpack.c.l.bf16 %v54
    %v59 = vsub.f32 1.0, %v47
    %v60 = vsub.f32 1.0, %v48
    %v61 = vsub.f32 1.0, %v49
    %v62 = vsub.f32 1.0, %v50
    %v63 = vmul.f32 %v59, 2.0
    %v64 = vmul.f32 %v60, 2.0
    %v65 = vmul.f32 %v61, 2.0
    %v66 = vmul.f32 %v62, 2.0
    %v67 = vmax.f32 %v63, 1e-06
    %v68 = vmax.f32 %v64, 1e-06
    %v69 = vmax.f32 %v65, 1e-06
    %v70 = vmax.f32 %v66, 1e-06
    %v71 = vrsqrt.pop %v67
    %v72 = vmul.f32 %v71, %v67
    %v73 = vmul.f32 %v72, %v71
    %v74 = vmul.f32 0.5, %v73
    %v75 = vsub.f32 1.5, %v74
    %v76 = vmul.f32 %v71, %v75
    %v77 = vmul.f32 %v67, %v76
    %vm78 = vcmp.eq.f32.partialorder %v67, inf
    %v79 = vsel %vm78, %v67, %v77
    %vm80 = vcmp.eq.f32.partialorder %v67, 0.0
    %v81 = vand.u32 %v67, 2147483648
    %v82 = vsel %vm80, %v81, %v79
    %v83 = vrsqrt.pop %v68
    %v84 = vmul.f32 %v83, %v68
    %v85 = vmul.f32 %v84, %v83
    %v86 = vmul.f32 0.5, %v85
    %v87 = vsub.f32 1.5, %v86
    %v88 = vmul.f32 %v83, %v87
    %v89 = vmul.f32 %v68, %v88
    %vm90 = vcmp.eq.f32.partialorder %v68, inf
    %v91 = vsel %vm90, %v68, %v89
    %vm92 = vcmp.eq.f32.partialorder %v68, 0.0
    %v93 = vand.u32 %v68, 2147483648
    %v94 = vsel %vm92, %v93, %v91
    %v95 = vrsqrt.pop %v69
    %v96 = vmul.f32 %v95, %v69
    %v97 = vmul.f32 %v96, %v95
    %v98 = vmul.f32 0.5, %v97
    %v99 = vsub.f32 1.5, %v98
    %v100 = vmul.f32 %v95, %v99
    %v101 = vmul.f32 %v69, %v100
    %vm102 = vcmp.eq.f32.partialorder %v69, inf
    %v103 = vsel %vm102, %v69, %v101
    %vm104 = vcmp.eq.f32.partialorder %v69, 0.0
    %v105 = vand.u32 %v69, 2147483648
    %v106 = vsel %vm104, %v105, %v103
    %v107 = vrsqrt.pop %v70
    %v108 = vmul.f32 %v107, %v70
    %v109 = vmul.f32 %v108, %v107
    %v110 = vmul.f32 0.5, %v109
    %v111 = vsub.f32 1.5, %v110
    %v112 = vmul.f32 %v107, %v111
    %v113 = vmul.f32 %v70, %v112
    %vm114 = vcmp.eq.f32.partialorder %v70, inf
    %v115 = vsel %vm114, %v70, %v113
    %vm116 = vcmp.eq.f32.partialorder %v70, 0.0
    %v117 = vand.u32 %v70, 2147483648
    %v118 = vsel %vm116, %v117, %v115
    %v119 = vsub.f32 2.0, %v82
    %v120 = vsub.f32 2.0, %v94
    %v121 = vsub.f32 2.0, %v106
    %v122 = vsub.f32 2.0, %v118
    %123 = vmax.xlane.f32.xlu0 %v119
    %v124 = vpop.xlane.xlu0 %123
    %125 = vmax.xlane.f32.xlu0 %v120
    %v126 = vpop.xlane.xlu0 %125
    %127 = vmax.xlane.f32.xlu0 %v121
    %v128 = vpop.xlane.xlu0 %127
    %129 = vmax.xlane.f32.xlu0 %v122
    %v130 = vpop.xlane.xlu0 %129
    %v131 = vmax.f32 %v124, %v126
    %v132 = vrot.slane %v131, 4
    %v133 = vmax.f32 %v131, %v132
    %v134 = vrot.slane %v133, 2
    %v135 = vmax.f32 %v133, %v134
    %v136 = vrot.slane %v135, 1
    %v137 = vmax.f32 %v135, %v136
    %v138 = vmax.f32 %v128, %v130
    %v139 = vrot.slane %v138, 4
    %v140 = vmax.f32 %v138, %v139
    %v141 = vrot.slane %v140, 2
    %v142 = vmax.f32 %v140, %v141
    %v143 = vrot.slane %v142, 1
    %v144 = vmax.f32 %v142, %v143
    %v145 = vsub.f32 %v119, %v137
    %v146 = vsub.f32 %v120, %v137
    %v147 = vsub.f32 %v121, %v144
    %v148 = vsub.f32 %v122, %v144
    %v149 = vmul.f32 %v145, 1.442695
    %v150 = vpow.pop %v149
    %v151 = vmul.f32 %v146, 1.442695
    %v152 = vpow.pop %v151
    %v153 = vmul.f32 %v147, 1.442695
    %v154 = vpow.pop %v153
    %v155 = vmul.f32 %v148, 1.442695
    %v156 = vpow.pop %v155
    %157 = vadd.xlane.f32.xlu0 %v150
    %v158 = vpop.xlane.xlu0 %157
    %159 = vadd.xlane.f32.xlu0 %v152
    %v160 = vpop.xlane.xlu0 %159
    %161 = vadd.xlane.f32.xlu0 %v154
    %v162 = vpop.xlane.xlu0 %161
    %163 = vadd.xlane.f32.xlu0 %v156
    %v164 = vpop.xlane.xlu0 %163
    %v165 = vlog2.pop %v158
    %v166 = vmul.f32 %v165, 0.6931472
    %v167 = vlog2.pop %v160
    %v168 = vmul.f32 %v167, 0.6931472
    %v169 = vlog2.pop %v162
    %v170 = vmul.f32 %v169, 0.6931472
    %v171 = vlog2.pop %v164
    %v172 = vmul.f32 %v171, 0.6931472
    %v173 = vadd.f32 %v137, %v166
    %v174 = vadd.f32 %v137, %v168
    %v175 = vadd.f32 %v144, %v170
    %v176 = vadd.f32 %v144, %v172
    %v177 = vadd.f32 %v150, %v152
    %v178 = vrot.slane %v177, 4
    %v179 = vadd.f32 %v177, %v178
    %v180 = vrot.slane %v179, 2
    %v181 = vadd.f32 %v179, %v180
    %v182 = vrot.slane %v181, 1
    %v183 = vadd.f32 %v181, %v182
    %v184 = vadd.f32 %v154, %v156
    %v185 = vrot.slane %v184, 4
    %v186 = vadd.f32 %v184, %v185
    %v187 = vrot.slane %v186, 2
    %v188 = vadd.f32 %v186, %v187
    %v189 = vrot.slane %v188, 1
    %v190 = vadd.f32 %v188, %v189
    %v191 = vlog2.pop %v183
    %v192 = vmul.f32 %v191, 0.6931472
    %v193 = vlog2.pop %v190
    %v194 = vmul.f32 %v193, 0.6931472
    %v195 = vadd.f32 %v137, %v192
    %v196 = vadd.f32 %v144, %v194
    %197 = vadd.xlane.f32.xlu0 %v55
    %v198 = vpop.xlane.xlu0 %197
    %199 = vadd.xlane.f32.xlu0 %v56
    %v200 = vpop.xlane.xlu0 %199
    %201 = vadd.xlane.f32.xlu0 %v57
    %v202 = vpop.xlane.xlu0 %201
    %203 = vadd.xlane.f32.xlu0 %v58
    %v204 = vpop.xlane.xlu0 %203
    %v205 = vadd.f32 %v55, %v56
    %v206 = vrot.slane %v205, 4
    %v207 = vadd.f32 %v205, %v206
    %v208 = vrot.slane %v207, 2
    %v209 = vadd.f32 %v207, %v208
    %v210 = vrot.slane %v209, 1
    %v211 = vadd.f32 %v209, %v210
    %v212 = vadd.f32 %v57, %v58
    %v213 = vrot.slane %v212, 4
    %v214 = vadd.f32 %v212, %v213
    %v215 = vrot.slane %v214, 2
    %v216 = vadd.f32 %v214, %v215
    %v217 = vrot.slane %v216, 1
    %v218 = vadd.f32 %v216, %v217
    %v219 = vadd.f32 %v198, %v200
    %v220 = vrot.slane %v219, 4
    %v221 = vadd.f32 %v219, %v220
    %v222 = vrot.slane %v221, 2
    %v223 = vadd.f32 %v221, %v222
    %v224 = vrot.slane %v223, 1
    %v225 = vadd.f32 %v223, %v224
    %v226 = vadd.f32 %v202, %v204
    %v227 = vrot.slane %v226, 4
    %v228 = vadd.f32 %v226, %v227
    %v229 = vrot.slane %v228, 2
    %v230 = vadd.f32 %v228, %v229
    %v231 = vrot.slane %v230, 1
    %v232 = vadd.f32 %v230, %v231
    %v233 = vmul.f32 %v55, %v119
    %v234 = vmul.f32 %v56, %v120
    %v235 = vmul.f32 %v57, %v121
    %v236 = vmul.f32 %v58, %v122
    %237 = vadd.xlane.f32.xlu0 %v233
    %v238 = vpop.xlane.xlu0 %237
    %239 = vadd.xlane.f32.xlu0 %v234
    %v240 = vpop.xlane.xlu0 %239
    %241 = vadd.xlane.f32.xlu0 %v235
    %v242 = vpop.xlane.xlu0 %241
    %243 = vadd.xlane.f32.xlu0 %v236
    %v244 = vpop.xlane.xlu0 %243
    %v245 = vadd.f32 %v238, %v240
    %v246 = vrot.slane %v245, 4
    %v247 = vadd.f32 %v245, %v246
    %v248 = vrot.slane %v247, 2
    %v249 = vadd.f32 %v247, %v248
    %v250 = vrot.slane %v249, 1
    %v251 = vadd.f32 %v249, %v250
    %v252 = vadd.f32 %v242, %v244
    %v253 = vrot.slane %v252, 4
    %v254 = vadd.f32 %v252, %v253
    %v255 = vrot.slane %v254, 2
    %v256 = vadd.f32 %v254, %v255
    %v257 = vrot.slane %v256, 1
    %v258 = vadd.f32 %v256, %v257
    %v259 = vmul.f32 %v198, %v173
    %v260 = vmul.f32 %v200, %v174
    %v261 = vmul.f32 %v202, %v175
    %v262 = vmul.f32 %v204, %v176
    %v263 = vadd.f32 %v259, %v260
    %v264 = vrot.slane %v263, 4
    %v265 = vadd.f32 %v263, %v264
    %v266 = vrot.slane %v265, 2
    %v267 = vadd.f32 %v265, %v266
    %v268 = vrot.slane %v267, 1
    %v269 = vadd.f32 %v267, %v268
    %v270 = vadd.f32 %v261, %v262
    %v271 = vrot.slane %v270, 4
    %v272 = vadd.f32 %v270, %v271
    %v273 = vrot.slane %v272, 2
    %v274 = vadd.f32 %v272, %v273
    %v275 = vrot.slane %v274, 1
    %v276 = vadd.f32 %v274, %v275
    %v277 = vmul.f32 %v211, %v195
    %v278 = vmul.f32 %v218, %v196
    %279 = vadd.xlane.f32.xlu0 %v277
    %v280 = vpop.xlane.xlu0 %279
    %281 = vadd.xlane.f32.xlu0 %v278
    %v282 = vpop.xlane.xlu0 %281
    %v283 = vmax.f32 %v225, 1.0
    %v284 = vmax.f32 %v232, 1.0
    %v285 = vmul.f32 %v251, 2.0
    %v286 = vmul.f32 %v258, 2.0
    %v287 = vsub.f32 %v285, %v269
    %v288 = vsub.f32 %v286, %v276
    %v289 = vsub.f32 %v287, %v280
    %v290 = vsub.f32 %v288, %v282
    %v291 = vmul.f32 %v289, -0.5
    %v292 = vmul.f32 %v290, -0.5
    %v293 = vrcp.pop %v283
    %v294 = vmul.f32 %v283, %v293
    %v295 = vsub.f32 1.0, %v294
    %v296 = vmul.f32 %v293, %v295
    %v297 = vadd.f32 %v293, %v296
    %vm298 = vweird.f32 %v283
    %vm299 = vweird.f32 %v293
    %vm300 = vmor %vm298, %vm299
    %v301 = vsel %vm300, %v293, %v297
    %v302 = vand.u32 2147483647, %v283
    %vm303 = vcmp.eq.f32.partialorder %v302, 8.507059e+37
    %v304 = vand.u32 %v283, 2147483648
    %v305 = vor.u32 1.1754944e-38, %v304
    %v306 = vsel %vm303, %v305, %v301
    %v307 = vmul.f32 %v291, %v306
    %v308 = vrcp.pop %v284
    %v309 = vmul.f32 %v284, %v308
    %v310 = vsub.f32 1.0, %v309
    %v311 = vmul.f32 %v308, %v310
    %v312 = vadd.f32 %v308, %v311
    %vm313 = vweird.f32 %v284
    %vm314 = vweird.f32 %v308
    %vm315 = vmor %vm313, %vm314
    %v316 = vsel %vm315, %v308, %v312
    %v317 = vand.u32 2147483647, %v284
    %vm318 = vcmp.eq.f32.partialorder %v317, 8.507059e+37
    %v319 = vand.u32 %v284, 2147483648
    %v320 = vor.u32 1.1754944e-38, %v319
    %v321 = vsel %vm318, %v320, %v316
    %v322 = vmul.f32 %v292, %v321
    %323 = vst [vmem:[#allocation7] sm:$0x1] %v307
    %324 = vst [vmem:[#allocation7 + $0x1] sm:$0x1] %v322
    %325 = vst [vmem:[#allocation8] sm:$0x1] %v283
    %326 = vst [vmem:[#allocation8 + $0x1] sm:$0x1] %v284
    // Predicated region
    $region18: #{tpu_custom_call.1} parent=1 // pred_check
      _
    $region19: #{tpu_custom_call.1} parent=1 // pred_check_branch
      %328 = sbr.rel (0) target = $region21
    $region20: #{tpu_custom_call.1} parent=1 // pred_region
      %330 = vsyncadd [#allocation4], 0
      %s331 = sshll.u32 [#allocation7], 4
      %s332 = int_to_ptr.vmem [resolvable:$true] %s331
      %s333 = sshll.u32 %s2, 4
      %s334 = int_to_ptr.hbm [resolvable:$true] %s333
      %339 = dma.vmem_to_hbm [thread:$0]  %s332, 32, %s334, [#allocation4], 16, 16, 1
    $region21: #{tpu_custom_call.1} parent=1 // pred_fallthru
      _
    // Predicated region
    $region22: #{tpu_custom_call.1} parent=1 // pred_check
      _
    $region23: #{tpu_custom_call.1} parent=1 // pred_check_branch
      %341 = sbr.rel (0) target = $region25
    $region24: #{tpu_custom_call.1} parent=1 // pred_region
      %343 = vsyncadd [#allocation9], 0
      %s344 = sshll.u32 [#allocation8], 4
      %s345 = int_to_ptr.vmem [resolvable:$true] %s344
      %s346 = sshll.u32 %s3, 4
      %s347 = int_to_ptr.hbm [resolvable:$true] %s346
      %352 = dma.vmem_to_hbm [thread:$0]  %s345, 32, %s347, [#allocation9], 16, 16, 1
    $region25: #{tpu_custom_call.1} parent=1 // pred_fallthru
      _
    // Predicated region
    $region26: #{tpu_custom_call.1} parent=1 // pred_check
      _
    $region27: #{tpu_custom_call.1} parent=1 // pred_check_branch
      %354 = sbr.rel (0) target = $region29
    $region28: #{tpu_custom_call.1} parent=1 // pred_region
      %356 = dma.done [#allocation4], 32
    $region29: #{tpu_custom_call.1} parent=1 // pred_fallthru
      _
    // Predicated region
    $region30: #{tpu_custom_call.1} parent=1 // pred_check
      _
    $region31: #{tpu_custom_call.1} parent=1 // pred_check_branch
      %358 = sbr.rel (0) target = $region33
    $region32: #{tpu_custom_call.1} parent=1 // pred_region
      %360 = dma.done [#allocation9], 32
    $region33: #{tpu_custom_call.1} parent=1 // pred_fallthru
      _
    %361 = vsyncpa [#allocation3], 1
    %362 = vsyncpa [#allocation6], 1
    %363 = vsyncpa [#allocation4], 1
    %364 = vsyncpa [#allocation9], 1

</llo_original>
